<compile_context>
chip_gen: v5e
topology: v5e:2x2
jax: 0.10.0
libtpu: 0.0.40
codegen_flags: <defaults>
</compile_context>

<pallas_src>
import functools
import math

import jax
import jax.numpy as jnp
from jax import lax
from jax.experimental import pallas as pl
from jax.experimental.pallas import tpu as pltpu

NEG_INF = -1e30  # finite mask fill: first kv block always has unmasked cols


def _pick_tile(s, preferred):
    """Largest tile <= preferred that divides s and is a multiple of 8."""
    t = min(preferred, (s // 8) * 8)
    while t >= 8:
        if s % t == 0:
            return t
        t -= 8
    return None  # caller pads the sequence so this never leaks


def _default_tiles():
    """(q_tile, kv_tile, seq_tile) preferences by chip generation."""
    try:
        kind = jax.devices()[0].device_kind.lower()
    except Exception:
        kind = ""
    if ("v5e" in kind) or ("v5 lite" in kind) or ("v5litepod" in kind):
        return 128, 128, 256      # v5e: 4x128^2 MXU, single vst slot
    return 256, 512, 512          # v6e / v7x: bigger kv + streaming tiles


# --------------------------------------------------------------------------- #
# 1) Fused QKV projection (single matmul for Q, K and V of all heads)          #
# --------------------------------------------------------------------------- #
def _qkv_kernel(x_ref, w_ref, b_ref, q_ref, k_ref, v_ref, *, Hhd):
    x = x_ref[...].astype(jnp.bfloat16)                                # (ts, D)
    # One long-N MXU push covering Q|K|V for all heads at once.
    y = jnp.dot(x, w_ref[...], preferred_element_type=jnp.float32) + b_ref[...]
    q_ref[...] = y[:, :Hhd].astype(q_ref.dtype)
    k_ref[...] = y[:, Hhd:2 * Hhd].astype(k_ref.dtype)
    v_ref[...] = y[:, 2 * Hhd:].astype(v_ref.dtype)


def _qkv_proj(x, w_all, b_all, Hhd, *, ts):
    # NOTE (v7x): for very large D * Hhd (>~ 2048^2) the resident (D, 3*Hhd)
    # slab should be tiled along the 3*Hhd axis to fit the 64 MiB VMEM; the
    # shapes used here keep it comfortably resident.
    B, S, D = x.shape
    out_sh = jax.ShapeDtypeStruct((B, S, Hhd), jnp.bfloat16)
    io_spec = pl.BlockSpec((None, ts, Hhd), lambda b, s: (b, s, 0))
    return pl.pallas_call(
        functools.partial(_qkv_kernel, Hhd=Hhd),
        out_shape=(out_sh, out_sh, out_sh),
        grid_spec=pltpu.PrefetchScalarGridSpec(
            num_scalar_prefetch=0,
            grid=(B, S // ts),
            in_specs=[
                pl.BlockSpec((None, ts, D), lambda b, s: (b, s, 0)),    # x tile
                pl.BlockSpec((D, 3 * Hhd), lambda b, s: (0, 0)),  # resident W
                pl.BlockSpec((1, 3 * Hhd), lambda b, s: (0, 0)),  # resident b
            ],
            out_specs=[io_spec, io_spec, io_spec],
        ),
        compiler_params=pltpu.CompilerParams(
            dimension_semantics=("parallel", "parallel"),
            vmem_limit_bytes=48 * 1024 * 1024),
    )(x, w_all, b_all)


# --------------------------------------------------------------------------- #
# 2) Causal flash attention (online softmax, block skipping, no score scratch)  #
# --------------------------------------------------------------------------- #
def _flash_attn_kernel(q_ref, k_ref, v_ref, o_ref, m_scr, l_scr, acc_scr,
                       *, tq, tk, scale):
    qi = pl.program_id(2)
    ki = pl.program_id(3)
    nk = pl.num_programs(3)
    q_start = qi * tq
    k_start = ki * tk

    @pl.when(ki == 0)
    def _init():
        m_scr[...] = jnp.full_like(m_scr, -jnp.inf)
        l_scr[...] = jnp.zeros_like(l_scr)
        acc_scr[...] = jnp.zeros_like(acc_scr)

    # Skip kv blocks lying entirely above the causal diagonal.
    @pl.when(k_start <= q_start + tq - 1)
    def _compute():
        q = q_ref[...]                                   # (tq, hd) bf16
        k = k_ref[...]                                   # (tk, hd) bf16
        v = v_ref[...]                                   # (tk, hd) bf16
        s = lax.dot_general(q, k, (((1,), (1,)), ((), ())),
                            preferred_element_type=jnp.float32) * scale
        # Causal mask applied on the value in vregs (no VMEM round trip).
        row = q_start + lax.broadcasted_iota(jnp.int32, (tq, tk), 0)
        col = k_start + lax.broadcasted_iota(jnp.int32, (tq, tk), 1)
        s = jnp.where(col > row, NEG_INF, s)

        m_prev = m_scr[...]
        m_new = jnp.maximum(m_prev, jnp.max(s, axis=-1, keepdims=True))
        alpha = jnp.exp(m_prev - m_new)
        p = jnp.exp(s - m_new)
        l_scr[...] = alpha * l_scr[...] + jnp.sum(p, axis=-1, keepdims=True)
        acc_scr[...] = alpha * acc_scr[...] + jnp.dot(
            p.astype(jnp.bfloat16), v, preferred_element_type=jnp.float32)
        m_scr[...] = m_new

    # Emit this q tile's output on the last kv block it actually needs.
    last_k = jnp.minimum(nk - 1, (q_start + tq - 1) // tk)

    @pl.when(ki == last_k)
    def _finalize():
        o_ref[...] = (acc_scr[...] *
                      pl.reciprocal(l_scr[...], approx=True)).astype(o_ref.dtype)


def _flash_attention(q, k, v, H, hd, *, tq, tk, fused_layout):
    scale = 1.0 / math.sqrt(hd)
    kernel = functools.partial(_flash_attn_kernel, tq=tq, tk=tk, scale=scale)

    def last_block(qi):  # last kv block index a given q tile needs
        return (qi * tq + tq - 1) // tk

    if fused_layout:
        # q/k/v are (B, S, H*hd); per-head slices are lane-aligned (hd % 128 == 0).
        B, S, _ = q.shape
        q_spec = pl.BlockSpec((None, tq, hd), lambda b, h, qi, ki: (b, qi, h))
        kv_spec = pl.BlockSpec(
            (None, tk, hd),
            lambda b, h, qi, ki: (b, jnp.minimum(ki, last_block(qi)), h))
        o_spec = pl.BlockSpec((None, tq, hd), lambda b, h, qi, ki: (b, qi, h))
        out_shape = jax.ShapeDtypeStruct((B, S, H * hd), jnp.bfloat16)
    else:
        # q/k/v are (B, H, S, hd).
        B, _, S, _ = q.shape
        q_spec = pl.BlockSpec((None, None, tq, hd),
                              lambda b, h, qi, ki: (b, h, qi, 0))
        kv_spec = pl.BlockSpec(
            (None, None, tk, hd),
            lambda b, h, qi, ki: (b, h, jnp.minimum(ki, last_block(qi)), 0))
        o_spec = pl.BlockSpec((None, None, tq, hd),
                              lambda b, h, qi, ki: (b, h, qi, 0))
        out_shape = jax.ShapeDtypeStruct((B, H, S, hd), jnp.bfloat16)

    return pl.pallas_call(
        kernel,
        out_shape=out_shape,
        grid_spec=pltpu.PrefetchScalarGridSpec(
            num_scalar_prefetch=0,
            grid=(B, H, S // tq, S // tk),
            in_specs=[q_spec, kv_spec, kv_spec],   # clamped -> no DMA for skipped blocks
            out_specs=o_spec,
            scratch_shapes=[
                pltpu.VMEM((tq, 1), jnp.float32),    # running max m
                pltpu.VMEM((tq, 1), jnp.float32),    # running sum l
                pltpu.VMEM((tq, hd), jnp.float32),   # output accumulator
            ],
        ),
        compiler_params=pltpu.CompilerParams(
            dimension_semantics=("parallel", "parallel", "parallel", "arbitrary"),
            vmem_limit_bytes=32 * 1024 * 1024),
    )(q, k, v)


# --------------------------------------------------------------------------- #
# 3) Output projection                                                         #
# --------------------------------------------------------------------------- #
def _proj_headmerge_kernel(ctx_ref, wp_ref, bp_ref, o_ref, acc_scr):
    """Head-merge fused into the projection: accumulate sum_h ctx_h @ Wp_h."""
    h = pl.program_id(2)

    @pl.when(h == 0)
    def _init():
        acc_scr[...] = jnp.zeros_like(acc_scr)

    acc_scr[...] += jnp.dot(ctx_ref[...], wp_ref[...],
                            preferred_element_type=jnp.float32)

    @pl.when(h == pl.num_programs(2) - 1)
    def _fin():
        o_ref[...] = (acc_scr[...] + bp_ref[...]).astype(o_ref.dtype)


def _projection_headmerge(ctx, wp_hb, bp_f, *, ts):
    # ctx: (B, H, S, hd) bf16, wp_hb: (H, hd, D) bf16 -> (B, S, D) f32
    B, H, S, hd = ctx.shape
    D = wp_hb.shape[-1]
    return pl.pallas_call(
        _proj_headmerge_kernel,
        out_shape=jax.ShapeDtypeStruct((B, S, D), jnp.float32),
        grid_spec=pltpu.PrefetchScalarGridSpec(
            num_scalar_prefetch=0,
            grid=(B, S // ts, H),
            in_specs=[
                pl.BlockSpec((None, None, ts, hd), lambda b, s, h: (b, h, s, 0)),
                pl.BlockSpec((None, hd, D), lambda b, s, h: (h, 0, 0)),
                pl.BlockSpec((1, D), lambda b, s, h: (0, 0)),
            ],
            out_specs=pl.BlockSpec((None, ts, D), lambda b, s, h: (b, s, 0)),
            scratch_shapes=[pltpu.VMEM((ts, D), jnp.float32)],
        ),
        compiler_params=pltpu.CompilerParams(
            dimension_semantics=("parallel", "parallel", "arbitrary"),
            vmem_limit_bytes=48 * 1024 * 1024),
    )(ctx, wp_hb, bp_f)


def _proj_fused_kernel(ctx_ref, wp_ref, bp_ref, o_ref):
    o_ref[...] = (jnp.dot(ctx_ref[...], wp_ref[...],
                          preferred_element_type=jnp.float32)
                  + bp_ref[...]).astype(o_ref.dtype)


def _projection_fused(ctx, wp_f, bp_f, *, ts):
    # ctx: (B, S, Hhd) bf16, wp_f: (Hhd, D) bf16 -> (B, S, D) f32
    B, S, Hhd = ctx.shape
    D = wp_f.shape[-1]
    return pl.pallas_call(
        _proj_fused_kernel,
        out_shape=jax.ShapeDtypeStruct((B, S, D), jnp.float32),
        grid_spec=pltpu.PrefetchScalarGridSpec(
            num_scalar_prefetch=0,
            grid=(B, S // ts),
            in_specs=[
                pl.BlockSpec((None, ts, Hhd), lambda b, s: (b, s, 0)),
                pl.BlockSpec((Hhd, D), lambda b, s: (0, 0)),   # resident weight
                pl.BlockSpec((1, D), lambda b, s: (0, 0)),
            ],
            out_specs=pl.BlockSpec((None, ts, D), lambda b, s: (b, s, 0)),
        ),
        compiler_params=pltpu.CompilerParams(
            dimension_semantics=("parallel", "parallel"),
            vmem_limit_bytes=48 * 1024 * 1024),
    )(ctx, wp_f, bp_f)


# --------------------------------------------------------------------------- #
# Top-level MHSA                                                               #
# --------------------------------------------------------------------------- #
def mhsa(x, wq, bq, wk, bk, wv, bv, wp, bp, *,
         q_tile=None, kv_tile=None, seq_tile=None):
    """Multi-head causal self-attention + output projection (forward).

    Layout: x (B,S,D); Wq/Wk/Wv (H,D,hd); bq/bk/bv (H,hd); Wp (H,hd,D); bp (1,D).
    """
    B, S, D = x.shape
    H, _, hd = wq.shape
    Hhd = H * hd

    dq, dk, dts = _default_tiles()
    q_tile = q_tile or dq
    kv_tile = kv_tile or dk
    seq_tile = seq_tile or dts

    # Pad S to a multiple of 8 so an aligned tile always exists; padded key
    # positions are causally masked, padded query rows are sliced off below.
    S_orig = S
    pad = (-S) % 8
    if pad:
        x = jnp.pad(x, ((0, 0), (0, pad), (0, 0)))
        S = S + pad

    ts = _pick_tile(S, seq_tile)
    tq = _pick_tile(S, q_tile)
    tk = _pick_tile(S, kv_tile)

    # ---- layout plumbing (XLA, once per call): fused bf16 weight slabs ------
    def fuse_w(w):   # (H, D, hd) -> (D, H*hd), head-major columns
        return jnp.transpose(w, (1, 0, 2)).reshape(D, Hhd)

    w_all = jnp.concatenate([fuse_w(wq), fuse_w(wk), fuse_w(wv)],
                            axis=1).astype(jnp.bfloat16)            # (D, 3*Hhd)
    b_all = jnp.concatenate([bq.reshape(1, Hhd), bk.reshape(1, Hhd),
                             bv.reshape(1, Hhd)], axis=1).astype(jnp.float32)
    bp_f = bp.reshape(1, D).astype(jnp.float32)

    # 1) fused QKV projection -> three (B, S, H*hd) bf16 tensors
    q, k, v = _qkv_proj(x, w_all, b_all, Hhd, ts=ts)

    fused_layout = (hd % 128 == 0)
    if fused_layout:
        # Per-head slices read/written straight in the fused layout: no XLA
        # split/merge transposes at all.
        ctx = _flash_attention(q, k, v, H, hd, tq=tq, tk=tk, fused_layout=True)
        out = _projection_fused(ctx, wp.reshape(Hhd, D).astype(jnp.bfloat16),
                                bp_f, ts=ts)
    else:
        # hd not lane-aligned: split heads once in XLA for attention, then fuse
        # the head merge into the projection kernel (bf16 ctx, no merge transpose).
        def split_heads(t):
            return jnp.transpose(t.reshape(B, S, H, hd), (0, 2, 1, 3))

        ctx = _flash_attention(split_heads(q), split_heads(k), split_heads(v),
                               H, hd, tq=tq, tk=tk, fused_layout=False)
        out = _projection_headmerge(ctx, wp.astype(jnp.bfloat16), bp_f, ts=ts)

    if pad:
        out = out[:, :S_orig, :]
    return out


# --------------------------------------------------------------------------- #
# Pure-JAX reference mirroring the PyTorch module                              #
# --------------------------------------------------------------------------- #
def mhsa_reference(x, wq, bq, wk, bk, wv, bv, wp, bp):
    B, S, D = x.shape
    H, _, hd = wq.shape
    outs = []
    for h in range(H):
        q = x @ wq[h] + bq[h]
        k = x @ wk[h] + bk[h]
        v = x @ wv[h] + bv[h]
        scores = q @ jnp.swapaxes(k, -1, -2) * (1.0 / hd ** 0.5)
        mask = jnp.triu(jnp.ones((S, S), bool), k=1)
        scores = jnp.where(mask, -jnp.inf, scores)
        p = jax.nn.softmax(scores, axis=-1)
        outs.append(p @ v)
    cat = jnp.concatenate(outs, axis=-1)            # (B, S, H*hd)
    wp_full = wp.reshape(H * hd, D)
    return cat @ wp_full + bp[0]


if __name__ == "__main__":
    B, S, D = 2, 8, 32
    H, hd = 4, 8          # num_heads * head_dim == d_model

    key = jax.random.PRNGKey(0)
    ks = jax.random.split(key, 10)
    x = jax.random.normal(ks[0], (B, S, D), jnp.float32)

    wq = jax.random.normal(ks[1], (H, D, hd), jnp.float32) * 0.1
    bq = jax.random.normal(ks[2], (H, hd), jnp.float32) * 0.1
    wk = jax.random.normal(ks[3], (H, D, hd), jnp.float32) * 0.1
    bk = jax.random.normal(ks[4], (H, hd), jnp.float32) * 0.1
    wv = jax.random.normal(ks[5], (H, D, hd), jnp.float32) * 0.1
    bv = jax.random.normal(ks[6], (H, hd), jnp.float32) * 0.1
    wp = jax.random.normal(ks[7], (H, hd, D), jnp.float32) * 0.1  # Linear(D,D).weight.T reshaped
    bp = jax.random.normal(ks[8], (1, D), jnp.float32) * 0.1

    out = mhsa(x, wq, bq, wk, bk, wv, bv, wp, bp)
    out = jax.block_until_ready(out)

    ref = mhsa_reference(x, wq, bq, wk, bk, wv, bv, wp, bp)
    assert out.shape == (B, S, D)
    # bf16 MXU operands (f32 accumulation) -> compare with relaxed tolerance
    assert jnp.allclose(out, ref, atol=2e-2, rtol=2e-2), "mismatch vs reference"

    print("KERNEL_OK")
</pallas_src>

<mosaic_0001>
module attributes {stable_mosaic.version = 11 : i64} {
  func.func @_qkv_kernel(%arg0: i32, %arg1: i32, %arg2: memref<1x8x32xf32, #tpu.memory_space<vmem>>, %arg3: memref<32x96xbf16, #tpu.memory_space<vmem>>, %arg4: memref<1x96xf32, #tpu.memory_space<vmem>>, %arg5: memref<1x8x32xbf16, #tpu.memory_space<vmem>>, %arg6: memref<1x8x32xbf16, #tpu.memory_space<vmem>>, %arg7: memref<1x8x32xbf16, #tpu.memory_space<vmem>>) attributes {dimension_semantics = [#tpu.dimension_semantics<parallel>, #tpu.dimension_semantics<parallel>], iteration_bounds = array<i64: 2, 1>, scalar_prefetch = 0 : i64, scratch_operands = 0 : i64, tpu.core_type = #tpu.core_type<tc>, window_params = [{transform_indices = @transform_0, window_bounds = array<i64: 1, 8, 32>}, {pipeline_mode = #tpu.pipeline_mode<synchronous>, transform_indices = @transform_1, window_bounds = array<i64: 32, 96>}, {pipeline_mode = #tpu.pipeline_mode<synchronous>, transform_indices = @transform_2, window_bounds = array<i64: 1, 96>}, {transform_indices = @transform_3, window_bounds = array<i64: 1, 8, 32>}, {transform_indices = @transform_4, window_bounds = array<i64: 1, 8, 32>}, {transform_indices = @transform_5, window_bounds = array<i64: 1, 8, 32>}]} {
    %c0 = arith.constant 0 : index
    %c0_0 = arith.constant 0 : index
    %c0_1 = arith.constant 0 : index
    %0 = vector.load %arg2[%c0, %c0_0, %c0_1] : memref<1x8x32xf32, #tpu.memory_space<vmem>>, vector<1x8x32xf32>
    %1 = vector.shape_cast %0 : vector<1x8x32xf32> to vector<8x32xf32>
    %2 = arith.truncf %1 : vector<8x32xf32> to vector<8x32xbf16>
    %c0_2 = arith.constant 0 : index
    %c0_3 = arith.constant 0 : index
    %3 = vector.load %arg3[%c0_2, %c0_3] : memref<32x96xbf16, #tpu.memory_space<vmem>>, vector<32x96xbf16>
    %cst = arith.constant dense<0.000000e+00> : vector<8x96xf32>
    %4 = tpu.matmul %2, %3, %cst {dimension_numbers = #tpu.dot_dimension_numbers<[1], [0], [0], [1], [0, 0, 1, 1], [], []>} : vector<8x32xbf16>, vector<32x96xbf16>, vector<8x96xf32> -> vector<8x96xf32>
    %c0_4 = arith.constant 0 : index
    %c0_5 = arith.constant 0 : index
    %5 = vector.load %arg4[%c0_4, %c0_5] : memref<1x96xf32, #tpu.memory_space<vmem>>, vector<1x96xf32>
    %6 = vector.broadcast %5 : vector<1x96xf32> to vector<8x96xf32>
    %7 = arith.addf %4, %6 : vector<8x96xf32>
    %8 = vector.extract_strided_slice %7 {offsets = [0, 0], sizes = [8, 32], strides = [1, 1]} : vector<8x96xf32> to vector<8x32xf32>
    %9 = arith.truncf %8 : vector<8x32xf32> to vector<8x32xbf16>
    %c0_6 = arith.constant 0 : index
    %c0_7 = arith.constant 0 : index
    %c0_8 = arith.constant 0 : index
    %10 = vector.load %arg5[%c0_6, %c0_7, %c0_8] : memref<1x8x32xbf16, #tpu.memory_space<vmem>>, vector<1x8x32xbf16>
    %11 = vector.shape_cast %10 : vector<1x8x32xbf16> to vector<8x32xbf16>
    %12 = vector.shape_cast %9 : vector<8x32xbf16> to vector<1x8x32xbf16>
    tpu.vector_store %arg5[%c0_6, %c0_7, %c0_8], %12 {strides = array<i32>} : memref<1x8x32xbf16, #tpu.memory_space<vmem>>, vector<1x8x32xbf16>,
    %13 = vector.extract_strided_slice %7 {offsets = [0, 32], sizes = [8, 32], strides = [1, 1]} : vector<8x96xf32> to vector<8x32xf32>
    %14 = arith.truncf %13 : vector<8x32xf32> to vector<8x32xbf16>
    %c0_9 = arith.constant 0 : index
    %c0_10 = arith.constant 0 : index
    %c0_11 = arith.constant 0 : index
    %15 = vector.load %arg6[%c0_9, %c0_10, %c0_11] : memref<1x8x32xbf16, #tpu.memory_space<vmem>>, vector<1x8x32xbf16>
    %16 = vector.shape_cast %15 : vector<1x8x32xbf16> to vector<8x32xbf16>
    %17 = vector.shape_cast %14 : vector<8x32xbf16> to vector<1x8x32xbf16>
    tpu.vector_store %arg6[%c0_9, %c0_10, %c0_11], %17 {strides = array<i32>} : memref<1x8x32xbf16, #tpu.memory_space<vmem>>, vector<1x8x32xbf16>,
    %18 = vector.extract_strided_slice %7 {offsets = [0, 64], sizes = [8, 32], strides = [1, 1]} : vector<8x96xf32> to vector<8x32xf32>
    %19 = arith.truncf %18 : vector<8x32xf32> to vector<8x32xbf16>
    %c0_12 = arith.constant 0 : index
    %c0_13 = arith.constant 0 : index
    %c0_14 = arith.constant 0 : index
    %20 = vector.load %arg7[%c0_12, %c0_13, %c0_14] : memref<1x8x32xbf16, #tpu.memory_space<vmem>>, vector<1x8x32xbf16>
    %21 = vector.shape_cast %20 : vector<1x8x32xbf16> to vector<8x32xbf16>
    %22 = vector.shape_cast %19 : vector<8x32xbf16> to vector<1x8x32xbf16>
    tpu.vector_store %arg7[%c0_12, %c0_13, %c0_14], %22 {strides = array<i32>} : memref<1x8x32xbf16, #tpu.memory_space<vmem>>, vector<1x8x32xbf16>,
    return
  }
  func.func @transform_0(%arg0: i32, %arg1: i32) -> (i32, i32, i32) {
    %c0_i32 = arith.constant 0 : i32
    %c0_i32_0 = arith.constant 0 : i32
    return %arg0, %arg1, %c0_i32 : i32, i32, i32
  }
  func.func @transform_1(%arg0: i32, %arg1: i32) -> (i32, i32) {
    %c0_i32 = arith.constant 0 : i32
    %c0_i32_0 = arith.constant 0 : i32
    %c0_i32_1 = arith.constant 0 : i32
    return %c0_i32, %c0_i32_0 : i32, i32
  }
  func.func @transform_2(%arg0: i32, %arg1: i32) -> (i32, i32) {
    %c0_i32 = arith.constant 0 : i32
    %c0_i32_0 = arith.constant 0 : i32
    %c0_i32_1 = arith.constant 0 : i32
    return %c0_i32, %c0_i32_0 : i32, i32
  }
  func.func @transform_3(%arg0: i32, %arg1: i32) -> (i32, i32, i32) {
    %c0_i32 = arith.constant 0 : i32
    %c0_i32_0 = arith.constant 0 : i32
    return %arg0, %arg1, %c0_i32 : i32, i32, i32
  }
  func.func @transform_4(%arg0: i32, %arg1: i32) -> (i32, i32, i32) {
    %c0_i32 = arith.constant 0 : i32
    %c0_i32_0 = arith.constant 0 : i32
    return %arg0, %arg1, %c0_i32 : i32, i32, i32
  }
  func.func @transform_5(%arg0: i32, %arg1: i32) -> (i32, i32, i32) {
    %c0_i32 = arith.constant 0 : i32
    %c0_i32_0 = arith.constant 0 : i32
    return %arg0, %arg1, %c0_i32 : i32, i32, i32
  }
}

</mosaic_0001>

<llo_original>
// kernel: tpu_custom_call.1
$region0: #{tpu_custom_call.1}
  #allocation0 [shape = 'u32[]', space=smem, size = 0x4, offset = 0x4, fixed_abs, tag = 'smem constant byte address 0x4 - core index']
  #allocation1 [shape = 'u32[72,128]{1,0:T(1,128)}', space=vmem, size = 0x9000, scoped, tag = 'internal scratch']
  %s0 = inlined_call_operand.hbm [shape: f32[2,8,32], index: 0, kind: input, shape index: {}]
  %s1 = inlined_call_operand.hbm [shape: bf16[32,96], index: 1, kind: input, shape index: {}]
  %s2 = inlined_call_operand.vmem [shape: f32[1,96], index: 2, kind: input, shape index: {}]
  %s3 = inlined_call_operand.hbm [shape: bf16[2,8,32], index: 3, kind: output, shape index: {0}]
  %s4 = inlined_call_operand.hbm [shape: bf16[2,8,32], index: 4, kind: output, shape index: {1}]
  %s5 = inlined_call_operand.hbm [shape: bf16[2,8,32], index: 5, kind: output, shape index: {2}]
  %6 = xla_tuple %s3, %s4, %s5
  %s7 = sld [smem:[#allocation0]]
  $region69: #{tpu_custom_call.1} parent=0
    _
  %s9 = ssub.s32 1, %s7
  %s10 = scalar_select 0, %s9, %s7
  $region1: #{tpu_custom_call.1} parent=0
    #allocation2 [shape = 'u8[8192]{0}', space=vmem, size = 0x2000, scoped, tag = 'input window, operand 0']
    #allocation3 [shape = 's32[2]{0}', space=sflag, size = 0x8, scoped, tag = 'scoped memory for tpu_custom_call.1']
    #allocation4 [shape = 's32[2]{0}', space=sflag, size = 0x8, scoped, tag = 'scoped memory for tpu_custom_call.1']
    #allocation5 [shape = 'u8[8192]{0}', space=vmem, size = 0x2000, scoped, tag = 'input window, operand 1, single buffered']
    #allocation6 [shape = 's32[1]{0}', space=sflag, size = 0x4, scoped, tag = 'scoped memory for tpu_custom_call.1']
    #allocation7 [shape = 'u8[4096]{0}', space=vmem, size = 0x1000, scoped, tag = 'output window, operand 0']
    #allocation8 [shape = 'u8[4096]{0}', space=vmem, size = 0x1000, scoped, tag = 'output window, operand 1']
    #allocation9 [shape = 's32[2]{0}', space=sflag, size = 0x8, scoped, tag = 'scoped memory for tpu_custom_call.1']
    #allocation10 [shape = 'u8[4096]{0}', space=vmem, size = 0x1000, scoped, tag = 'output window, operand 2']
    %11 = vsyncpa [#allocation3], 0
    %s12 = scalar_lea.sflag [#allocation3], 1
    %13 = vsyncpa %s12, 0
    %14 = vsyncpa [#allocation6], 0
    %15 = vsyncpa [#allocation4], 0
    %s16 = scalar_lea.sflag [#allocation4], 1
    %17 = vsyncpa %s16, 0
    %18 = vsyncpa [#allocation9], 0
    %s19 = scalar_lea.sflag [#allocation9], 1
    %20 = vsyncpa %s19, 0
    loop: start=0, step=1, limit=4
    $region2: #{tpu_custom_call.1} parent=1 // loop_pre_header
      _
    $region3: #{tpu_custom_call.1} parent=1 // loop_header
      %s22 = sphi 0, %s26
      %p23 = scmp.ge.s32.totalorder %s22, 4
      %s29 = sphi 0, %s41
      %s30 = sphi 0, %s37
      %s31 = sphi 0, %s29
      %s32 = sphi 0, %s30
      %s33 = sphi 0, %s31
      %s34 = sphi 0, %s32
      %s46 = sphi 0, %s48
      %s49 = sphi 0, %s46
      %s50 = sphi 0, %s49
      %s66 = sphi 0, %s50
      %s70 = sphi 0, %s70
      %s72 = sphi 0, %s70
      %s73 = sphi 0, %s72
      %s87 = sphi 0, %s73
      %s91 = sphi 0, %s91
      %s93 = sphi 0, %s91
      %s94 = sphi 0, %s93
      %s108 = sphi 0, %s94
      %s116 = sphi 0, %s118
      %s119 = sphi 0, %s116
      %s120 = sphi 0, %s119
      %s136 = sphi 0, %s120
      %s144 = sphi 0, %s146
      %s147 = sphi 0, %s144
      %s148 = sphi 0, %s147
      %s164 = sphi 0, %s148
      %s172 = sphi 0, %s174
      %s175 = sphi 0, %s172
      %s176 = sphi 0, %s175
      %s192 = sphi 0, %s176
    $region4: #{tpu_custom_call.1} parent=1 // loop_header_branch
      %25 = sbr.rel (%p23) target = $region8
    $region5: #{tpu_custom_call.1} parent=1 // loop_body
      %s27 = ssub.s32 %s22, 1
      %s28 = ssub.s32 %s22, 2
      %s35 = sadd.s32 1, %s30
      %p36 = scmp.ge.s32.totalorder %s35, 1
      %s37 = scalar_select %p36, 0, %s35
      %s38 = sadd.s32 1, %s29
      %s39 = scalar_select %p36, %s38, %s29
      %p40 = scmp.ge.s32.totalorder %s39, 2
      %s41 = scalar_select %p40, 0, %s39
      %s42 = ssub.s32 %s29, %s41
      %s43 = ssub.s32 %s30, %s37
      %s44 = sor.u32 %s42, %s43
      %p45 = scmp.eq.s32.totalorder %s44, 0
      %s47 = sadd.s32 %s46, 1
      %s48 = scalar_select %p45, %s46, %s47
      %p51 = pneg %p45
      %p52 = scmp.eq.s32.totalorder %s22, 1
      %p53 = por %p51, %p52
      %p54 = scmp.ne.s32.totalorder %s46, %s49
      %p55 = scmp.eq.s32.totalorder %s22, 0
      %p56 = por %p54, %p55
      %p57 = scmp.ne.s32.totalorder %s46, %s49
      %p58 = scmp.eq.s32.totalorder %s27, 1
      %p59 = por %p57, %p58
      %p60 = scmp.ne.s32.totalorder %s49, %s50
      %p61 = scmp.eq.s32.totalorder %s27, 0
      %p62 = por %p60, %p61
      %p63 = scmp.ne.s32.totalorder %s49, %s50
      %p64 = scmp.eq.s32.totalorder %s28, 1
      %p65 = por %p63, %p64
      %p67 = scmp.ne.s32.totalorder %s50, %s66
      %p68 = scmp.eq.s32.totalorder %s28, 0
      %p69 = por %p67, %p68
      %s71 = sadd.s32 %s70, 1
      %p74 = scmp.eq.s32.totalorder %s22, 1
      %p75 = scmp.ne.s32.totalorder %s70, %s72
      %p76 = scmp.eq.s32.totalorder %s22, 0
      %p77 = por %p75, %p76
      %p78 = scmp.ne.s32.totalorder %s70, %s72
      %p79 = scmp.eq.s32.totalorder %s27, 1
      %p80 = por %p78, %p79
      %p81 = scmp.ne.s32.totalorder %s72, %s73
      %p82 = scmp.eq.s32.totalorder %s27, 0
      %p83 = por %p81, %p82
      %p84 = scmp.ne.s32.totalorder %s72, %s73
      %p85 = scmp.eq.s32.totalorder %s28, 1
      %p86 = por %p84, %p85
      %p88 = scmp.ne.s32.totalorder %s73, %s87
      %p89 = scmp.eq.s32.totalorder %s28, 0
      %p90 = por %p88, %p89
      %s92 = sadd.s32 %s91, 1
      %p95 = scmp.eq.s32.totalorder %s22, 1
      %p96 = scmp.ne.s32.totalorder %s91, %s93
      %p97 = scmp.eq.s32.totalorder %s22, 0
      %p98 = por %p96, %p97
      %p99 = scmp.ne.s32.totalorder %s91, %s93
      %p100 = scmp.eq.s32.totalorder %s27, 1
      %p101 = por %p99, %p100
      %p102 = scmp.ne.s32.totalorder %s93, %s94
      %p103 = scmp.eq.s32.totalorder %s27, 0
      %p104 = por %p102, %p103
      %p105 = scmp.ne.s32.totalorder %s93, %s94
      %p106 = scmp.eq.s32.totalorder %s28, 1
      %p107 = por %p105, %p106
      %p109 = scmp.ne.s32.totalorder %s94, %s108
      %p110 = scmp.eq.s32.totalorder %s28, 0
      %p111 = por %p109, %p110
      %s112 = ssub.s32 %s29, %s41
      %s113 = ssub.s32 %s30, %s37
      %s114 = sor.u32 %s112, %s113
      %p115 = scmp.eq.s32.totalorder %s114, 0
      %s117 = sadd.s32 %s116, 1
      %s118 = scalar_select %p115, %s116, %s117
      %p121 = pneg %p115
      %p122 = scmp.eq.s32.totalorder %s22, 1
      %p123 = por %p121, %p122
      %p124 = scmp.ne.s32.totalorder %s116, %s119
      %p125 = scmp.eq.s32.totalorder %s22, 0
      %p126 = por %p124, %p125
      %p127 = scmp.ne.s32.totalorder %s116, %s119
      %p128 = scmp.eq.s32.totalorder %s27, 1
      %p129 = por %p127, %p128
      %p130 = scmp.ne.s32.totalorder %s119, %s120
      %p131 = scmp.eq.s32.totalorder %s27, 0
      %p132 = por %p130, %p131
      %p133 = scmp.ne.s32.totalorder %s119, %s120
      %p134 = scmp.eq.s32.totalorder %s28, 1
      %p135 = por %p133, %p134
      %p137 = scmp.ne.s32.totalorder %s120, %s136
      %p138 = scmp.eq.s32.totalorder %s28, 0
      %p139 = por %p137, %p138
      %s140 = ssub.s32 %s29, %s41
      %s141 = ssub.s32 %s30, %s37
      %s142 = sor.u32 %s140, %s141
      %p143 = scmp.eq.s32.totalorder %s142, 0
      %s145 = sadd.s32 %s144, 1
      %s146 = scalar_select %p143, %s144, %s145
      %p149 = pneg %p143
      %p150 = scmp.eq.s32.totalorder %s22, 1
      %p151 = por %p149, %p150
      %p152 = scmp.ne.s32.totalorder %s144, %s147
      %p153 = scmp.eq.s32.totalorder %s22, 0
      %p154 = por %p152, %p153
      %p155 = scmp.ne.s32.totalorder %s144, %s147
      %p156 = scmp.eq.s32.totalorder %s27, 1
      %p157 = por %p155, %p156
      %p158 = scmp.ne.s32.totalorder %s147, %s148
      %p159 = scmp.eq.s32.totalorder %s27, 0
      %p160 = por %p158, %p159
      %p161 = scmp.ne.s32.totalorder %s147, %s148
      %p162 = scmp.eq.s32.totalorder %s28, 1
      %p163 = por %p161, %p162
      %p165 = scmp.ne.s32.totalorder %s148, %s164
      %p166 = scmp.eq.s32.totalorder %s28, 0
      %p167 = por %p165, %p166
      %s168 = ssub.s32 %s29, %s41
      %s169 = ssub.s32 %s30, %s37
      %s170 = sor.u32 %s168, %s169
      %p171 = scmp.eq.s32.totalorder %s170, 0
      %s173 = sadd.s32 %s172, 1
      %s174 = scalar_select %p171, %s172, %s173
      %p177 = pneg %p171
      %p178 = scmp.eq.s32.totalorder %s22, 1
      %p179 = por %p177, %p178
      %p180 = scmp.ne.s32.totalorder %s172, %s175
      %p181 = scmp.eq.s32.totalorder %s22, 0
      %p182 = por %p180, %p181
      %p183 = scmp.ne.s32.totalorder %s172, %s175
      %p184 = scmp.eq.s32.totalorder %s27, 1
      %p185 = por %p183, %p184
      %p186 = scmp.ne.s32.totalorder %s175, %s176
      %p187 = scmp.eq.s32.totalorder %s27, 0
      %p188 = por %p186, %p187
      %p189 = scmp.ne.s32.totalorder %s175, %s176
      %p190 = scmp.eq.s32.totalorder %s28, 1
      %p191 = por %p189, %p190
      %p193 = scmp.ne.s32.totalorder %s176, %s192
      %p194 = scmp.eq.s32.totalorder %s28, 0
      %p195 = por %p193, %p194
      %p196 = scmp.le.s32.totalorder 1, %s22
      %p197 = scmp.lt.s32.totalorder %s22, 3
      %p198 = pnand %p196, %p197
      %p199 = pneg %p198
      // Predicated region
      $region9: #{tpu_custom_call.1} parent=5 // pred_check
        _
      $region10: #{tpu_custom_call.1} parent=5 // pred_check_branch
        %201 = sbr.rel (%p198) target = $region12
      $region11: #{tpu_custom_call.1} parent=5 // pred_region
        %s202 = ssub.s32 %s22, 1
        // Predicated region
        $region13: #{tpu_custom_call.1} parent=11 // pred_check
          %p203 = pneg %p83
        $region14: #{tpu_custom_call.1} parent=11 // pred_check_branch
          %205 = sbr.rel (%p203) target = $region16
        $region15: #{tpu_custom_call.1} parent=11 // pred_region
          %207 = vsyncadd [#allocation6], 0
          %s208 = sshll.u32 %s1, 4
          %s209 = int_to_ptr.hbm [resolvable:$true] %s208
          %s210 = sshll.u32 [#allocation5], 4
          %s211 = int_to_ptr.vmem [resolvable:$true] %s210
          %216 = dma.hbm_to_vmem [thread:$0]  %s209, 256, %s211, [#allocation6], 64, 64, 4
        $region16: #{tpu_custom_call.1} parent=11 // pred_fallthru
          _
        // Predicated region
        $region17: #{tpu_custom_call.1} parent=11 // pred_check
          %p217 = pneg %p104
        $region18: #{tpu_custom_call.1} parent=11 // pred_check_branch
          %219 = sbr.rel (%p217) target = $region20
        $region19: #{tpu_custom_call.1} parent=11 // pred_region
          _
        $region20: #{tpu_custom_call.1} parent=11 // pred_fallthru
          _
      $region12: #{tpu_custom_call.1} parent=5 // pred_fallthru
        _
      %p220 = scmp.lt.s32.totalorder %s22, 2
      // Predicated region
      $region21: #{tpu_custom_call.1} parent=5 // pred_check
        %p221 = pneg %p220
      $region22: #{tpu_custom_call.1} parent=5 // pred_check_branch
        %223 = sbr.rel (%p221) target = $region24
      $region23: #{tpu_custom_call.1} parent=5 // pred_region
        // Predicated region
        $region25: #{tpu_custom_call.1} parent=23 // pred_check
          %p224 = pneg %p56
        $region26: #{tpu_custom_call.1} parent=23 // pred_check_branch
          %226 = sbr.rel (%p224) target = $region28
        $region27: #{tpu_custom_call.1} parent=23 // pred_region
          %s227 = sand.u32 %s46, 1
          %s228 = scalar_lea.sflag [#allocation3], %s227
          %s229 = sand.u32 %s46, 1
          %s230 = smul.addr %s229, 8
          %s231 = scalar_lea.vmem [#allocation2], %s230
          %233 = vsyncadd %s228, 0
          %s234 = sadd.s32 %s30, %s29
          %s235 = smul.addr %s234, 8
          %s236 = scalar_lea.hbm %s0, %s235
          %s238 = sshll.u32 %s236, 4
          %s239 = int_to_ptr.hbm [resolvable:$true] %s238
          %s240 = sshll.u32 %s231, 4
          %s241 = int_to_ptr.vmem [resolvable:$true] %s240
          %243 = dma.hbm_to_vmem [thread:$0]  %s239, 128, %s241, %s228
        $region28: #{tpu_custom_call.1} parent=23 // pred_fallthru
          _
      $region24: #{tpu_custom_call.1} parent=5 // pred_fallthru
        _
      %p244 = scmp.le.s32.totalorder 1, %s22
      %p245 = scmp.lt.s32.totalorder %s22, 3
      %p246 = pnand %p244, %p245
      %p247 = pneg %p246
      // Predicated region
      $region29: #{tpu_custom_call.1} parent=5 // pred_check
        _
      $region30: #{tpu_custom_call.1} parent=5 // pred_check_branch
        %249 = sbr.rel (%p246) target = $region32
      $region31: #{tpu_custom_call.1} parent=5 // pred_region
        %s250 = ssub.s32 %s22, 1
        %s251 = sand.u32 %s49, 1
        %s252 = scalar_lea.sflag [#allocation3], %s251
        %s253 = sand.u32 %s49, 1
        %s254 = smul.addr %s253, 8
        %s255 = scalar_lea.vmem [#allocation2], %s254
        // Predicated region
        $region33: #{tpu_custom_call.1} parent=31 // pred_check
          %p256 = pneg %p62
        $region34: #{tpu_custom_call.1} parent=31 // pred_check_branch
          %258 = sbr.rel (%p256) target = $region36
        $region35: #{tpu_custom_call.1} parent=31 // pred_region
          %260 = dma.done %s252, 128
        $region36: #{tpu_custom_call.1} parent=31 // pred_fallthru
          _
        // Predicated region
        $region37: #{tpu_custom_call.1} parent=31 // pred_check
          %p261 = pneg %p83
        $region38: #{tpu_custom_call.1} parent=31 // pred_check_branch
          %263 = sbr.rel (%p261) target = $region40
        $region39: #{tpu_custom_call.1} parent=31 // pred_region
          %265 = dma.done [#allocation6], 256
        $region40: #{tpu_custom_call.1} parent=31 // pred_fallthru
          _
        %s266 = sand.u32 %s49, 1
        %s267 = scalar_lea.sflag [#allocation3], %s266
        %s268 = sand.u32 %s49, 1
        %s269 = smul.addr %s268, 8
        %s270 = scalar_lea.vmem [#allocation2], %s269
        %p271 = pneg %p62
        %p272 = pneg %p59
        %p273 = pneg %p83
        %p274 = pneg %p80
        %p275 = pneg %p104
        %p276 = pneg %p101
        %p277 = pneg %p132
        %p278 = pneg %p129
        %s279 = sand.u32 %s119, 1
        %s280 = scalar_lea.sflag [#allocation4], %s279
        %s281 = sand.u32 %s119, 1
        %s282 = smul.addr %s281, 4
        %s283 = scalar_lea.vmem [#allocation7], %s282
        %p284 = pneg %p160
        %p285 = pneg %p157
        %s286 = sand.u32 %s27, 1
        %s287 = scalar_lea.sflag [#allocation9], %s286
        %s288 = sand.u32 %s147, 1
        %s289 = smul.addr %s288, 4
        %s290 = scalar_lea.vmem [#allocation8], %s289
        %p291 = pneg %p188
        %p292 = pneg %p185
        %s293 = sand.u32 %s27, 1
        %s294 = scalar_lea.sflag [#allocation9], %s293
        %s295 = sand.u32 %s175, 1
        %s296 = smul.addr %s295, 4
        %s297 = scalar_lea.vmem [#allocation10], %s296
        %v299 = vld [vmem:[%s255] sm:$0xff]
        %v300 = vpack.c.bf16 %v299, %v299
        %v301 = vld [vmem:[#allocation5] sm:$0xf]
        %v302 = vld [vmem:[#allocation5 + $0x4] sm:$0xf]
        %v303 = vld [vmem:[#allocation5 + $0x8] sm:$0xf]
        %v304 = vld [vmem:[#allocation5 + $0xc] sm:$0xf]
        %v305 = vld [vmem:[%s2] sm:$0x1]
        %v307 = vperm.slane %v305, 0
        %v313 = vunpack.c.l.b16 %v301
        %v314 = vunpack.c.l.b16 %v302
        %v315 = vunpack.c.l.b16 %v303
        %v316 = vunpack.c.l.b16 %v304
        %v317 = vpack.c.b16 %v314, %v313
        %v318 = vpack.c.b16 %v316, %v315
        %vm321 = vcmask 261120
        %v323 = vsel %vm321, %v300, 0
        %325 = vmatpush.bf16.msra.mxu0 0
        %326 = vmatpush.bf16.msra.mxu0 0
        %327 = vmatpush.bf16.msra.mxu0 0
        %328 = vmatpush.bf16.msra.mxu0 0
        %329 = vmatpush.bf16.msra.mxu0 0
        %330 = vmatpush.bf16.msra.mxu0 0
        %331 = vmatpush.bf16.msra.mxu0 %v318
        %332 = vmatpush.bf16.msra.mxu0 %v317
        %333 = vmatmul.bf16.gmra.mxu0 %v323
        %v334 = vpop.f32.mrf.mxu0
        %v335 = vadd.f32 %v307, %v334
        %v336 = vpop.f32.mrf.mxu0
        %337 = vdwg.mxu0
        %v338 = vpack.c.bf16 %v335, %v335
        %vm339 = vcmask 257024
        %340 = vst.msk [vmem:[%s283] sm:$0xf] %vm339, %v338
        %342 = vrot.lane.b32.xlu0 %v338, 96
        %v343 = vpop.permute.xlu0 %342
        %345 = vst.msk [vmem:[%s290] sm:$0xf] %vm339, %v343
        %346 = vrot.lane.b32.xlu0 %v338, 64
        %v347 = vpop.permute.xlu0 %346
        %349 = vst.msk [vmem:[%s297] sm:$0xf] %vm339, %v347
        %s350 = sand.u32 %s119, 1
        %s351 = scalar_lea.sflag [#allocation4], %s350
        %s352 = sand.u32 %s119, 1
        %s353 = smul.addr %s352, 4
        %s354 = scalar_lea.vmem [#allocation7], %s353
        %s355 = sand.u32 %s27, 1
        %s356 = scalar_lea.sflag [#allocation9], %s355
        %s357 = sand.u32 %s147, 1
        %s358 = smul.addr %s357, 4
        %s359 = scalar_lea.vmem [#allocation8], %s358
        %s360 = sand.u32 %s27, 1
        %s361 = scalar_lea.sflag [#allocation9], %s360
        %s362 = sand.u32 %s175, 1
        %s363 = smul.addr %s362, 4
        %s364 = scalar_lea.vmem [#allocation10], %s363
        // Predicated region
        $region41: #{tpu_custom_call.1} parent=31 // pred_check
          %p365 = pneg %p129
        $region42: #{tpu_custom_call.1} parent=31 // pred_check_branch
          %367 = sbr.rel (%p365) target = $region44
        $region43: #{tpu_custom_call.1} parent=31 // pred_region
          %369 = vsyncadd %s351, 0
          %s370 = sadd.s32 %s32, %s31
          %s371 = smul.addr %s370, 4
          %s372 = scalar_lea.hbm %s3, %s371
          %s374 = sshll.u32 %s354, 4
          %s375 = int_to_ptr.vmem [resolvable:$true] %s374
          %s376 = sshll.u32 %s372, 4
          %s377 = int_to_ptr.hbm [resolvable:$true] %s376
          %379 = dma.vmem_to_hbm [thread:$0]  %s375, 64, %s377, %s351
        $region44: #{tpu_custom_call.1} parent=31 // pred_fallthru
          _
        // Predicated region
        $region45: #{tpu_custom_call.1} parent=31 // pred_check
          %p380 = pneg %p157
        $region46: #{tpu_custom_call.1} parent=31 // pred_check_branch
          %382 = sbr.rel (%p380) target = $region48
        $region47: #{tpu_custom_call.1} parent=31 // pred_region
          %384 = vsyncadd %s356, 0
          %s385 = sadd.s32 %s32, %s31
          %s386 = smul.addr %s385, 4
          %s387 = scalar_lea.hbm %s4, %s386
          %s389 = sshll.u32 %s359, 4
          %s390 = int_to_ptr.vmem [resolvable:$true] %s389
          %s391 = sshll.u32 %s387, 4
          %s392 = int_to_ptr.hbm [resolvable:$true] %s391
          %394 = dma.vmem_to_hbm [thread:$0]  %s390, 64, %s392, %s356
        $region48: #{tpu_custom_call.1} parent=31 // pred_fallthru
          _
        // Predicated region
        $region49: #{tpu_custom_call.1} parent=31 // pred_check
          %p395 = pneg %p185
        $region50: #{tpu_custom_call.1} parent=31 // pred_check_branch
          %397 = sbr.rel (%p395) target = $region52
        $region51: #{tpu_custom_call.1} parent=31 // pred_region
          %399 = vsyncadd %s361, 0
          %s400 = sadd.s32 %s32, %s31
          %s401 = smul.addr %s400, 4
          %s402 = scalar_lea.hbm %s5, %s401
          %s404 = sshll.u32 %s364, 4
          %s405 = int_to_ptr.vmem [resolvable:$true] %s404
          %s406 = sshll.u32 %s402, 4
          %s407 = int_to_ptr.hbm [resolvable:$true] %s406
          %409 = dma.vmem_to_hbm [thread:$0]  %s405, 64, %s407, %s361
        $region52: #{tpu_custom_call.1} parent=31 // pred_fallthru
          _
      $region32: #{tpu_custom_call.1} parent=5 // pred_fallthru
        _
      %p410 = scmp.le.s32.totalorder 2, %s22
      // Predicated region
      $region53: #{tpu_custom_call.1} parent=5 // pred_check
        %p411 = pneg %p410
      $region54: #{tpu_custom_call.1} parent=5 // pred_check_branch
        %413 = sbr.rel (%p411) target = $region56
      $region55: #{tpu_custom_call.1} parent=5 // pred_region
        %s414 = ssub.s32 %s22, 2
        // Predicated region
        $region57: #{tpu_custom_call.1} parent=55 // pred_check
          %p415 = pneg %p135
        $region58: #{tpu_custom_call.1} parent=55 // pred_check_branch
          %417 = sbr.rel (%p415) target = $region60
        $region59: #{tpu_custom_call.1} parent=55 // pred_region
          %s418 = sand.u32 %s120, 1
          %s419 = scalar_lea.sflag [#allocation4], %s418
          %s420 = sand.u32 %s120, 1
          %s421 = smul.addr %s420, 4
          %s422 = scalar_lea.vmem [#allocation7], %s421
          %424 = dma.done %s419, 64
        $region60: #{tpu_custom_call.1} parent=55 // pred_fallthru
          _
        // Predicated region
        $region61: #{tpu_custom_call.1} parent=55 // pred_check
          %p425 = pneg %p163
        $region62: #{tpu_custom_call.1} parent=55 // pred_check_branch
          %427 = sbr.rel (%p425) target = $region64
        $region63: #{tpu_custom_call.1} parent=55 // pred_region
          %s428 = sand.u32 %s28, 1
          %s429 = scalar_lea.sflag [#allocation9], %s428
          %s430 = sand.u32 %s148, 1
          %s431 = smul.addr %s430, 4
          %s432 = scalar_lea.vmem [#allocation8], %s431
          %434 = dma.done %s429, 64
        $region64: #{tpu_custom_call.1} parent=55 // pred_fallthru
          _
        // Predicated region
        $region65: #{tpu_custom_call.1} parent=55 // pred_check
          %p435 = pneg %p191
        $region66: #{tpu_custom_call.1} parent=55 // pred_check_branch
          %437 = sbr.rel (%p435) target = $region68
        $region67: #{tpu_custom_call.1} parent=55 // pred_region
          %s438 = sand.u32 %s28, 1
          %s439 = scalar_lea.sflag [#allocation9], %s438
          %s440 = sand.u32 %s176, 1
          %s441 = smul.addr %s440, 4
          %s442 = scalar_lea.vmem [#allocation10], %s441
          %444 = dma.done %s439, 64
        $region68: #{tpu_custom_call.1} parent=55 // pred_fallthru
          _
      $region56: #{tpu_custom_call.1} parent=5 // pred_fallthru
        _
    $region6: #{tpu_custom_call.1} parent=1 // loop_footer
      %s26 = sadd.s32 1, %s22
    $region7: #{tpu_custom_call.1} parent=1 // loop_footer_branch
      %21 = sbr.rel target = $region3
    $region8: #{tpu_custom_call.1} parent=1 // loop_exit
      _
    %445 = vsyncpa [#allocation3], 1
    %s446 = scalar_lea.sflag [#allocation3], 1
    %447 = vsyncpa %s446, 1
    %448 = vsyncpa [#allocation6], 1
    %449 = vsyncpa [#allocation4], 1
    %s450 = scalar_lea.sflag [#allocation4], 1
    %451 = vsyncpa %s450, 1
    %452 = vsyncpa [#allocation9], 1
    %s453 = scalar_lea.sflag [#allocation9], 1
    %454 = vsyncpa %s453, 1

</llo_original>
